<compile_context>
chip_gen: v6e
topology: v6e:2x2x1
jax: 0.10.0
libtpu: 0.0.40
codegen_flags: <defaults>
</compile_context>

<pallas_src>
import math

import jax
import jax.numpy as jnp
from jax import lax
from jax.experimental import pallas as pl
from jax.experimental.pallas import tpu as pltpu


# --------------------------------------------------------------------------- #
# Fused per-sequence Pallas kernel (grid over time, Q resident in VMEM)
# --------------------------------------------------------------------------- #
def _evolve_kernel(q0_ref, z_ref, idx_ref, scale_ref,
                   w_all_ref, u_ur_ref, u_h_ref, b_all_ref,
                   qhist_ref, q_scr):
    t = pl.program_id(0)
    rows, cols = q_scr.shape

    @pl.when(t == 0)
    def _():
        q_scr[...] = q0_ref[...]

    z = z_ref[0]                                   # (N, R)
    idx = idx_ref[0]                               # (cols, 1) int32 (padded)
    scale = scale_ref[0]                           # (cols, 1) f32 = tanh(scores[idx])
    n = z.shape[0]

    # Transposed one-hot gather:  Dt[j, v] = (v == idx[j]) * scale[j]
    sel = lax.broadcasted_iota(jnp.int32, (cols, n), 1) == idx        # (cols, N)
    dt = sel.astype(jnp.float32) * scale                              # (cols, N)
    z_topk_t = jnp.dot(dt, z, preferred_element_type=jnp.float32)     # (cols, R)

    # Stacked gate input projections:  W_all @ z_topk  (trans_b contraction).
    wz = lax.dot_general(w_all_ref[...], z_topk_t,
                         (((1,), (1,)), ((), ())),
                         preferred_element_type=jnp.float32)          # (3R, cols)

    q = q_scr[...]                                                    # (R, cols)
    uq = jnp.dot(u_ur_ref[...], q, preferred_element_type=jnp.float32)  # (2R, cols)
    b = b_all_ref[...]                                                # (3R, cols)

    upd = jax.nn.sigmoid(wz[0:rows] + uq[0:rows] + b[0:rows])
    rst = jax.nn.sigmoid(wz[rows:2 * rows] + uq[rows:2 * rows] + b[rows:2 * rows])
    hcap = jnp.tanh(
        wz[2 * rows:]
        + jnp.dot(u_h_ref[...], rst * q, preferred_element_type=jnp.float32)
        + b[2 * rows:])

    q_new = q + upd * (hcap - q)                   # == (1 - upd) * q + upd * hcap
    q_scr[...] = q_new
    qhist_ref[0] = q_new


def _evolve_call(prep, q0, z_seq, idx_seq, scale_seq):
    t_steps, n, r = z_seq.shape
    rows, cols = q0.shape
    grid_spec = pltpu.PrefetchScalarGridSpec(
        num_scalar_prefetch=0,
        grid=(t_steps,),
        in_specs=[
            pl.BlockSpec((rows, cols), lambda t: (0, 0)),          # prev_Q0
            pl.BlockSpec((1, n, r), lambda t: (t, 0, 0)),          # z_seq[t]
            pl.BlockSpec((1, cols, 1), lambda t: (t, 0, 0)),       # idx[t]
            pl.BlockSpec((1, cols, 1), lambda t: (t, 0, 0)),       # scale[t]
            pl.BlockSpec((3 * rows, rows), lambda t: (0, 0)),      # W_all
            pl.BlockSpec((2 * rows, rows), lambda t: (0, 0)),      # U_ur
            pl.BlockSpec((rows, rows), lambda t: (0, 0)),          # U_h
            pl.BlockSpec((3 * rows, cols), lambda t: (0, 0)),      # b_all
        ],
        out_specs=pl.BlockSpec((1, rows, cols), lambda t: (t, 0, 0)),
        scratch_shapes=[pltpu.VMEM((rows, cols), jnp.float32)],
    )
    return pl.pallas_call(
        _evolve_kernel,
        out_shape=jax.ShapeDtypeStruct((t_steps, rows, cols), jnp.float32),
        grid_spec=grid_spec,
        compiler_params=pltpu.CompilerParams(
            dimension_semantics=("arbitrary",)),   # Q carried in scratch -> sequential
    )(q0, z_seq, idx_seq, scale_seq,
      prep['W_all'], prep['U_ur'], prep['U_h'], prep['b_all'])


# --------------------------------------------------------------------------- #
# XLA-side precompute (hoisted out of the recurrence): scores, top-k, padding
# --------------------------------------------------------------------------- #
def _precompute_topk(scorer_hat_row, z_seq, mask_seq, k):
    """TopK.forward selection for all T steps at once (no Q dependence)."""
    hp = lax.Precision.HIGHEST
    # scores[t, n] = z_seq[t, n, :] @ (scorer / ||scorer||) + mask[t, n]
    scores = jnp.einsum('tnr,r->tn', z_seq, scorer_hat_row[0],
                        precision=hp) + mask_seq[..., 0]              # (T, N)
    vals, idx = lax.top_k(scores, k)                                  # (T, k)
    valid = vals > -jnp.inf                                           # pad_with_last_val
    cnt = jnp.sum(valid.astype(jnp.int32), axis=-1)                   # (T,)
    last = jnp.take_along_axis(idx, jnp.maximum(cnt - 1, 0)[:, None], axis=-1)
    idx = jnp.where(jnp.arange(k)[None, :] < cnt[:, None], idx, last).astype(jnp.int32)
    # Scale gathered at the PADDED idx so padded columns reuse the last valid
    # node's scale (clamp only guards the degenerate all-masked edge case;
    # same hazard class as the PyTorch original).
    gathered = jnp.take_along_axis(scores, idx, axis=-1)              # (T, k)
    scale = jnp.tanh(jnp.maximum(gathered, -30.0))
    return idx[:, :, None], scale[:, :, None]                         # (T, k, 1) each


def prepare_cell(cell):
    """Once-per-parameter-set preprocessing: normalize scorer, stack gate mats."""
    scorer = cell['scorer']                                           # (rows, 1)
    # NOTE: same div-by-zero hazard as the PyTorch original if scorer == 0.
    scorer_hat_row = (scorer / jnp.linalg.norm(scorer)).reshape(1, -1)
    w_all = jnp.concatenate([cell['update']['W'], cell['reset']['W'],
                             cell['htilda']['W']], axis=0)            # (3R, R)
    u_ur = jnp.concatenate([cell['update']['U'], cell['reset']['U']], axis=0)
    b_all = jnp.concatenate([cell['update']['b'], cell['reset']['b'],
                             cell['htilda']['b']], axis=0)            # (3R, cols)
    return dict(scorer_hat_row=scorer_hat_row, W_all=w_all, U_ur=u_ur,
                U_h=cell['htilda']['U'], b_all=b_all)


@jax.jit
def evolve(prep, q0, z_seq, mask_seq):
    """Run T sequential mat_GRU_cell steps; returns q_hist of shape (T, rows, cols)."""
    k = q0.shape[1]
    idx_seq, scale_seq = _precompute_topk(prep['scorer_hat_row'], z_seq, mask_seq, k)
    return _evolve_call(prep, q0, z_seq, idx_seq, scale_seq)


def mat_gru_cell(prep, prev_q, prev_z, mask):
    """Single mat_GRU_cell.forward step (T=1 instance of the fused kernel)."""
    return evolve(prep, prev_q, prev_z[None], mask[None])[0]


# --------------------------------------------------------------------------- #
# Pure-JAX reference mirroring the PyTorch math (for correctness check)
# --------------------------------------------------------------------------- #
def mat_gru_cell_ref(cell, prev_q, prev_z, mask):
    k = prev_q.shape[1]
    scorer = cell['scorer']
    hp = lax.Precision.HIGHEST
    scores = jnp.dot(prev_z, scorer / jnp.linalg.norm(scorer), precision=hp) + mask
    vals, idx = lax.top_k(scores[:, 0], k)
    valid = vals > -jnp.inf
    cnt = jnp.sum(valid.astype(jnp.int32))
    last = idx[jnp.maximum(cnt - 1, 0)]
    idx = jnp.where(jnp.arange(k) < cnt, idx, last)
    z_topk = (prev_z[idx] * jnp.tanh(scores[idx, 0])[:, None]).T

    def gate(g, x, h, act):
        return act(jnp.dot(g['W'], x, precision=hp)
                   + jnp.dot(g['U'], h, precision=hp) + g['b'])

    upd = gate(cell['update'], z_topk, prev_q, jax.nn.sigmoid)
    rst = gate(cell['reset'], z_topk, prev_q, jax.nn.sigmoid)
    hcap = gate(cell['htilda'], z_topk, rst * prev_q, jnp.tanh)
    return (1.0 - upd) * prev_q + upd * hcap


# ----------------------------- parameter init ------------------------------ #
def _uniform(key, shape, stdv):
    return jax.random.uniform(key, shape, jnp.float32, minval=-stdv, maxval=stdv)


def init_gate(key, rows, cols):
    kw, ku = jax.random.split(key)
    stdv = 1.0 / math.sqrt(rows)                   # uniform(-1/sqrt(size(1)), ...)
    return dict(W=_uniform(kw, (rows, rows), stdv),
                U=_uniform(ku, (rows, rows), stdv),
                b=jnp.zeros((rows, cols), jnp.float32))


def init_cell(key, rows, cols):
    k1, k2, k3, k4 = jax.random.split(key, 4)
    return dict(update=init_gate(k1, rows, cols),
                reset=init_gate(k2, rows, cols),
                htilda=init_gate(k3, rows, cols),
                scorer=_uniform(k4, (rows, 1), 1.0 / math.sqrt(rows)))


# ------------------------------------ main --------------------------------- #
if __name__ == "__main__":
    N, ROWS, COLS, T = 64, 16, 32, 4    # nodes, GRU rows (=feats), GRU cols (=k), steps

    key = jax.random.PRNGKey(0)
    k_cell, k_q, k_z = jax.random.split(key, 3)
    cell = init_cell(k_cell, ROWS, COLS)
    prep = prepare_cell(cell)           # hoisted once, outside the time loop

    prev_q0 = _uniform(k_q, (ROWS, COLS), 1.0 / math.sqrt(COLS))
    z_seq = jax.random.normal(k_z, (T, N, ROWS), jnp.float32)

    # Masks: step 0 keeps all nodes; later steps mask most nodes with -inf so
    # the pad_with_last_val path (fewer valid nodes than k) is exercised too.
    mask0 = jnp.zeros((N, 1), jnp.float32)
    maskt = jnp.where(jnp.arange(N)[:, None] < COLS - 8, 0.0, -jnp.inf).astype(jnp.float32)
    mask_seq = jnp.concatenate(
        [mask0[None], jnp.broadcast_to(maskt, (T - 1, N, 1))], axis=0)

    # Single fused kernel over the whole sequence (Q resident in VMEM scratch).
    q_hist = jax.block_until_ready(evolve(prep, prev_q0, z_seq, mask_seq))
    assert q_hist.shape == (T, ROWS, COLS), q_hist.shape
    assert bool(jnp.all(jnp.isfinite(q_hist)))

    # Correctness: compare every step against the pure-JAX reference of the
    # PyTorch math (default-precision MXU dots in-kernel => loose-ish tol).
    q_ref = prev_q0
    refs = []
    for t in range(T):
        q_ref = mat_gru_cell_ref(cell, q_ref, z_seq[t], mask_seq[t])
        refs.append(q_ref)
    q_ref_hist = jnp.stack(refs)
    err = float(jnp.max(jnp.abs(q_hist - q_ref_hist)))
    assert jnp.allclose(q_hist, q_ref_hist, atol=2e-2, rtol=2e-2), err

    # Single-step wrapper parity (T=1 instance of the same kernel).
    q1 = jax.block_until_ready(mat_gru_cell(prep, prev_q0, z_seq[0], mask_seq[0]))
    assert q1.shape == (ROWS, COLS)
    assert jnp.allclose(q1, q_ref_hist[0], atol=2e-2, rtol=2e-2)

    # TODO(synk): lax.top_k (the top-k sort/select itself) has no clean Pallas
    # TPU equivalent; it stays in XLA but is now hoisted fully out of the
    # sequential recurrence.
    print("KERNEL_OK")
</pallas_src>

<mosaic_0001>
module attributes {stable_mosaic.version = 11 : i64} {
  func.func @_evolve_kernel(%arg0: i32, %arg1: memref<16x32xf32, #tpu.memory_space<vmem>>, %arg2: memref<1x64x16xf32, #tpu.memory_space<vmem>>, %arg3: memref<1x32x1xi32, #tpu.memory_space<vmem>>, %arg4: memref<1x32x1xf32, #tpu.memory_space<vmem>>, %arg5: memref<48x16xf32, #tpu.memory_space<vmem>>, %arg6: memref<32x16xf32, #tpu.memory_space<vmem>>, %arg7: memref<16x16xf32, #tpu.memory_space<vmem>>, %arg8: memref<48x32xf32, #tpu.memory_space<vmem>>, %arg9: memref<1x16x32xf32, #tpu.memory_space<vmem>>, %arg10: memref<16x32xf32, #tpu.memory_space<vmem>>) attributes {dimension_semantics = [#tpu.dimension_semantics<arbitrary>], iteration_bounds = array<i64: 4>, scalar_prefetch = 0 : i64, scratch_operands = 1 : i64, tpu.core_type = #tpu.core_type<tc>, window_params = [{pipeline_mode = #tpu.pipeline_mode<synchronous>, transform_indices = @transform_0, window_bounds = array<i64: 16, 32>}, {transform_indices = @transform_1, window_bounds = array<i64: 1, 64, 16>}, {transform_indices = @transform_2, window_bounds = array<i64: 1, 32, 1>}, {transform_indices = @transform_3, window_bounds = array<i64: 1, 32, 1>}, {pipeline_mode = #tpu.pipeline_mode<synchronous>, transform_indices = @transform_4, window_bounds = array<i64: 48, 16>}, {pipeline_mode = #tpu.pipeline_mode<synchronous>, transform_indices = @transform_5, window_bounds = array<i64: 32, 16>}, {pipeline_mode = #tpu.pipeline_mode<synchronous>, transform_indices = @transform_6, window_bounds = array<i64: 16, 16>}, {pipeline_mode = #tpu.pipeline_mode<synchronous>, transform_indices = @transform_7, window_bounds = array<i64: 48, 32>}, {transform_indices = @transform_8, window_bounds = array<i64: 1, 16, 32>}]} {
    %c0_i32 = arith.constant 0 : i32
    %0 = arith.cmpi eq, %arg0, %c0_i32 : i32
    %1 = arith.extui %0 : i1 to i32
    %c0_i32_0 = arith.constant 0 : i32
    %2 = arith.cmpi ne, %1, %c0_i32_0 : i32
    scf.if %2 {
      %c0_29 = arith.constant 0 : index
      %c0_30 = arith.constant 0 : index
      %58 = vector.load %arg1[%c0_29, %c0_30] : memref<16x32xf32, #tpu.memory_space<vmem>>, vector<16x32xf32>
      %c0_31 = arith.constant 0 : index
      %c0_32 = arith.constant 0 : index
      %59 = vector.load %arg10[%c0_31, %c0_32] : memref<16x32xf32, #tpu.memory_space<vmem>>, vector<16x32xf32>
      tpu.vector_store %arg10[%c0_31, %c0_32], %58 {strides = array<i32>} : memref<16x32xf32, #tpu.memory_space<vmem>>, vector<16x32xf32>,
    } else {
    }
    %c0 = arith.constant 0 : index
    %c0_1 = arith.constant 0 : index
    %c0_2 = arith.constant 0 : index
    %3 = vector.load %arg2[%c0, %c0_1, %c0_2] : memref<1x64x16xf32, #tpu.memory_space<vmem>>, vector<1x64x16xf32>
    %4 = vector.shape_cast %3 : vector<1x64x16xf32> to vector<64x16xf32>
    %c0_3 = arith.constant 0 : index
    %c0_4 = arith.constant 0 : index
    %c0_5 = arith.constant 0 : index
    %5 = vector.load %arg3[%c0_3, %c0_4, %c0_5] : memref<1x32x1xi32, #tpu.memory_space<vmem>>, vector<1x32x1xi32>
    %6 = vector.shape_cast %5 : vector<1x32x1xi32> to vector<32x1xi32>
    %c0_6 = arith.constant 0 : index
    %c0_7 = arith.constant 0 : index
    %c0_8 = arith.constant 0 : index
    %7 = vector.load %arg4[%c0_6, %c0_7, %c0_8] : memref<1x32x1xf32, #tpu.memory_space<vmem>>, vector<1x32x1xf32>
    %8 = vector.shape_cast %7 : vector<1x32x1xf32> to vector<32x1xf32>
    %9 = tpu.iota {dimensions = array<i32: 1>} : vector<32x64xi32>
    %10 = vector.broadcast %6 : vector<32x1xi32> to vector<32x64xi32>
    %11 = arith.cmpi eq, %9, %10 : vector<32x64xi32>
    %12 = arith.extui %11 : vector<32x64xi1> to vector<32x64xi32>
    %13 = arith.sitofp %12 : vector<32x64xi32> to vector<32x64xf32>
    %14 = vector.broadcast %8 : vector<32x1xf32> to vector<32x64xf32>
    %15 = arith.mulf %13, %14 : vector<32x64xf32>
    %cst = arith.constant dense<0.000000e+00> : vector<32x16xf32>
    %16 = tpu.matmul %15, %4, %cst {dimension_numbers = #tpu.dot_dimension_numbers<[1], [0], [0], [1], [0, 0, 1, 1], [], []>} : vector<32x64xf32>, vector<64x16xf32>, vector<32x16xf32> -> vector<32x16xf32>
    %c0_9 = arith.constant 0 : index
    %c0_10 = arith.constant 0 : index
    %17 = vector.load %arg5[%c0_9, %c0_10] : memref<48x16xf32, #tpu.memory_space<vmem>>, vector<48x16xf32>
    %cst_11 = arith.constant dense<0.000000e+00> : vector<48x32xf32>
    %18 = tpu.matmul %17, %16, %cst_11 {dimension_numbers = #tpu.dot_dimension_numbers<[1], [1], [0], [0], [0, 0, 1, 0], [], []>} : vector<48x16xf32>, vector<32x16xf32>, vector<48x32xf32> -> vector<48x32xf32>
    %c0_12 = arith.constant 0 : index
    %c0_13 = arith.constant 0 : index
    %19 = vector.load %arg10[%c0_12, %c0_13] : memref<16x32xf32, #tpu.memory_space<vmem>>, vector<16x32xf32>
    %c0_14 = arith.constant 0 : index
    %c0_15 = arith.constant 0 : index
    %20 = vector.load %arg6[%c0_14, %c0_15] : memref<32x16xf32, #tpu.memory_space<vmem>>, vector<32x16xf32>
    %cst_16 = arith.constant dense<0.000000e+00> : vector<32x32xf32>
    %21 = tpu.matmul %20, %19, %cst_16 {dimension_numbers = #tpu.dot_dimension_numbers<[1], [0], [0], [1], [0, 0, 1, 1], [], []>} : vector<32x16xf32>, vector<16x32xf32>, vector<32x32xf32> -> vector<32x32xf32>
    %c0_17 = arith.constant 0 : index
    %c0_18 = arith.constant 0 : index
    %22 = vector.load %arg8[%c0_17, %c0_18] : memref<48x32xf32, #tpu.memory_space<vmem>>, vector<48x32xf32>
    %23 = vector.extract_strided_slice %18 {offsets = [0, 0], sizes = [16, 32], strides = [1, 1]} : vector<48x32xf32> to vector<16x32xf32>
    %24 = vector.extract_strided_slice %21 {offsets = [0, 0], sizes = [16, 32], strides = [1, 1]} : vector<32x32xf32> to vector<16x32xf32>
    %25 = arith.addf %23, %24 : vector<16x32xf32>
    %26 = vector.extract_strided_slice %22 {offsets = [0, 0], sizes = [16, 32], strides = [1, 1]} : vector<48x32xf32> to vector<16x32xf32>
    %27 = arith.addf %25, %26 : vector<16x32xf32>
    %28 = arith.negf %27 : vector<16x32xf32>
    %29 = math.exp %28 : vector<16x32xf32>
    %cst_19 = arith.constant 1.000000e+00 : f32
    %30 = vector.broadcast %cst_19 : f32 to vector<16x32xf32>
    %31 = arith.addf %30, %29 : vector<16x32xf32>
    %32 = arith.divf %30, %31 : vector<16x32xf32>
    %33 = vector.extract_strided_slice %18 {offsets = [16, 0], sizes = [16, 32], strides = [1, 1]} : vector<48x32xf32> to vector<16x32xf32>
    %34 = vector.extract_strided_slice %21 {offsets = [16, 0], sizes = [16, 32], strides = [1, 1]} : vector<32x32xf32> to vector<16x32xf32>
    %35 = arith.addf %33, %34 : vector<16x32xf32>
    %36 = vector.extract_strided_slice %22 {offsets = [16, 0], sizes = [16, 32], strides = [1, 1]} : vector<48x32xf32> to vector<16x32xf32>
    %37 = arith.addf %35, %36 : vector<16x32xf32>
    %38 = arith.negf %37 : vector<16x32xf32>
    %39 = math.exp %38 : vector<16x32xf32>
    %cst_20 = arith.constant 1.000000e+00 : f32
    %40 = vector.broadcast %cst_20 : f32 to vector<16x32xf32>
    %41 = arith.addf %40, %39 : vector<16x32xf32>
    %42 = arith.divf %40, %41 : vector<16x32xf32>
    %43 = vector.extract_strided_slice %18 {offsets = [32, 0], sizes = [16, 32], strides = [1, 1]} : vector<48x32xf32> to vector<16x32xf32>
    %c0_21 = arith.constant 0 : index
    %c0_22 = arith.constant 0 : index
    %44 = vector.load %arg7[%c0_21, %c0_22] : memref<16x16xf32, #tpu.memory_space<vmem>>, vector<16x16xf32>
    %45 = arith.mulf %42, %19 : vector<16x32xf32>
    %cst_23 = arith.constant dense<0.000000e+00> : vector<16x32xf32>
    %46 = tpu.matmul %44, %45, %cst_23 {dimension_numbers = #tpu.dot_dimension_numbers<[1], [0], [0], [1], [0, 0, 1, 1], [], []>} : vector<16x16xf32>, vector<16x32xf32>, vector<16x32xf32> -> vector<16x32xf32>
    %47 = arith.addf %43, %46 : vector<16x32xf32>
    %48 = vector.extract_strided_slice %22 {offsets = [32, 0], sizes = [16, 32], strides = [1, 1]} : vector<48x32xf32> to vector<16x32xf32>
    %49 = arith.addf %47, %48 : vector<16x32xf32>
    %50 = math.tanh %49 : vector<16x32xf32>
    %51 = arith.subf %50, %19 : vector<16x32xf32>
    %52 = arith.mulf %32, %51 : vector<16x32xf32>
    %53 = arith.addf %19, %52 : vector<16x32xf32>
    %c0_24 = arith.constant 0 : index
    %c0_25 = arith.constant 0 : index
    %54 = vector.load %arg10[%c0_24, %c0_25] : memref<16x32xf32, #tpu.memory_space<vmem>>, vector<16x32xf32>
    tpu.vector_store %arg10[%c0_24, %c0_25], %53 {strides = array<i32>} : memref<16x32xf32, #tpu.memory_space<vmem>>, vector<16x32xf32>,
    %c0_26 = arith.constant 0 : index
    %c0_27 = arith.constant 0 : index
    %c0_28 = arith.constant 0 : index
    %55 = vector.load %arg9[%c0_26, %c0_27, %c0_28] : memref<1x16x32xf32, #tpu.memory_space<vmem>>, vector<1x16x32xf32>
    %56 = vector.shape_cast %55 : vector<1x16x32xf32> to vector<16x32xf32>
    %57 = vector.shape_cast %53 : vector<16x32xf32> to vector<1x16x32xf32>
    tpu.vector_store %arg9[%c0_26, %c0_27, %c0_28], %57 {strides = array<i32>} : memref<1x16x32xf32, #tpu.memory_space<vmem>>, vector<1x16x32xf32>,
    return
  }
  func.func @transform_0(%arg0: i32) -> (i32, i32) {
    %c0_i32 = arith.constant 0 : i32
    %c0_i32_0 = arith.constant 0 : i32
    %c0_i32_1 = arith.constant 0 : i32
    return %c0_i32, %c0_i32_0 : i32, i32
  }
  func.func @transform_1(%arg0: i32) -> (i32, i32, i32) {
    %c0_i32 = arith.constant 0 : i32
    %c0_i32_0 = arith.constant 0 : i32
    %c0_i32_1 = arith.constant 0 : i32
    return %arg0, %c0_i32, %c0_i32_0 : i32, i32, i32
  }
  func.func @transform_2(%arg0: i32) -> (i32, i32, i32) {
    %c0_i32 = arith.constant 0 : i32
    %c0_i32_0 = arith.constant 0 : i32
    %c0_i32_1 = arith.constant 0 : i32
    return %arg0, %c0_i32, %c0_i32_0 : i32, i32, i32
  }
  func.func @transform_3(%arg0: i32) -> (i32, i32, i32) {
    %c0_i32 = arith.constant 0 : i32
    %c0_i32_0 = arith.constant 0 : i32
    %c0_i32_1 = arith.constant 0 : i32
    return %arg0, %c0_i32, %c0_i32_0 : i32, i32, i32
  }
  func.func @transform_4(%arg0: i32) -> (i32, i32) {
    %c0_i32 = arith.constant 0 : i32
    %c0_i32_0 = arith.constant 0 : i32
    %c0_i32_1 = arith.constant 0 : i32
    return %c0_i32, %c0_i32_0 : i32, i32
  }
  func.func @transform_5(%arg0: i32) -> (i32, i32) {
    %c0_i32 = arith.constant 0 : i32
    %c0_i32_0 = arith.constant 0 : i32
    %c0_i32_1 = arith.constant 0 : i32
    return %c0_i32, %c0_i32_0 : i32, i32
  }
  func.func @transform_6(%arg0: i32) -> (i32, i32) {
    %c0_i32 = arith.constant 0 : i32
    %c0_i32_0 = arith.constant 0 : i32
    %c0_i32_1 = arith.constant 0 : i32
    return %c0_i32, %c0_i32_0 : i32, i32
  }
  func.func @transform_7(%arg0: i32) -> (i32, i32) {
    %c0_i32 = arith.constant 0 : i32
    %c0_i32_0 = arith.constant 0 : i32
    %c0_i32_1 = arith.constant 0 : i32
    return %c0_i32, %c0_i32_0 : i32, i32
  }
  func.func @transform_8(%arg0: i32) -> (i32, i32, i32) {
    %c0_i32 = arith.constant 0 : i32
    %c0_i32_0 = arith.constant 0 : i32
    %c0_i32_1 = arith.constant 0 : i32
    return %arg0, %c0_i32, %c0_i32_0 : i32, i32, i32
  }
}

</mosaic_0001>

<llo_original>
// kernel: evolve.1
$region0: #{evolve.1}
  #allocation0 [shape = 'u32[]', space=smem, size = 0x4, offset = 0x4, fixed_abs, tag = 'smem constant byte address 0x4 - core index']
  #allocation1 [shape = 'u32[144,128]{1,0:T(1,128)}', space=vmem, size = 0x12000, scoped, tag = 'internal scratch']
  #allocation2 [shape = 'f32[16,32]{1,0:T(8,128)}', space=vmem, size = 0x2000, scoped, tag = 'scratch operand']
  %s0 = inlined_call_operand.vmem [shape: f32[16,32], index: 0, kind: input, shape index: {}]
  %s1 = inlined_call_operand.vmem [shape: f32[4,64,16], index: 1, kind: input, shape index: {}]
  %s2 = inlined_call_operand.vmem [shape: s32[4,32,1], index: 2, kind: input, shape index: {}]
  %s3 = inlined_call_operand.vmem [shape: f32[4,32,1], index: 3, kind: input, shape index: {}]
  %s4 = inlined_call_operand.vmem [shape: f32[48,16], index: 4, kind: input, shape index: {}]
  %s5 = inlined_call_operand.vmem [shape: f32[32,16], index: 5, kind: input, shape index: {}]
  %s6 = inlined_call_operand.vmem [shape: f32[16,16], index: 6, kind: input, shape index: {}]
  %s7 = inlined_call_operand.vmem [shape: f32[48,32], index: 7, kind: input, shape index: {}]
  %s8 = inlined_call_operand.hbm [shape: f32[4,16,32], index: 8, kind: output, shape index: {}]
  %s9 = sld [smem:[#allocation0]]
  $region69: #{evolve.1} parent=0
    _
  %s11 = ssub.s32 1, %s9
  %s12 = scalar_select 0, %s11, %s9
  $region1: #{evolve.1} parent=0
    #allocation3 [shape = 'u8[16384]{0}', space=vmem, size = 0x4000, scoped, tag = 'output window, operand 0']
    #allocation4 [shape = 's32[2]{0}', space=sflag, size = 0x8, scoped, tag = 'scoped memory for evolve.1']
    %13 = vsyncpa [#allocation4], 0
    %s14 = scalar_lea.sflag [#allocation4], 1
    %15 = vsyncpa %s14, 0
    loop: start=0, step=1, limit=6
    $region2: #{evolve.1} parent=1 // loop_pre_header
      _
    $region3: #{evolve.1} parent=1 // loop_header
      %s17 = sphi 0, %s21
      %p18 = scmp.ge.s32.totalorder %s17, 6
      %s25 = sphi 0, %s25
      %s27 = sphi 0, %s25
      %s28 = sphi 0, %s27
      %s42 = sphi 0, %s28
      %s48 = sphi 0, %s50
      %s51 = sphi 0, %s48
      %s52 = sphi 0, %s51
      %s68 = sphi 0, %s52
      %s74 = sphi 0, %s76
      %s77 = sphi 0, %s74
      %s78 = sphi 0, %s77
      %s94 = sphi 0, %s78
      %s100 = sphi 0, %s102
      %s103 = sphi 0, %s100
      %s104 = sphi 0, %s103
      %s120 = sphi 0, %s104
      %s124 = sphi 0, %s124
      %s126 = sphi 0, %s124
      %s127 = sphi 0, %s126
      %s141 = sphi 0, %s127
      %s145 = sphi 0, %s145
      %s147 = sphi 0, %s145
      %s148 = sphi 0, %s147
      %s162 = sphi 0, %s148
      %s166 = sphi 0, %s166
      %s168 = sphi 0, %s166
      %s169 = sphi 0, %s168
      %s183 = sphi 0, %s169
      %s187 = sphi 0, %s187
      %s189 = sphi 0, %s187
      %s190 = sphi 0, %s189
      %s204 = sphi 0, %s190
      %s210 = sphi 0, %s212
      %s213 = sphi 0, %s210
      %s214 = sphi 0, %s213
      %s230 = sphi 0, %s214
    $region4: #{evolve.1} parent=1 // loop_header_branch
      %20 = sbr.rel (%p18) target = $region8
    $region5: #{evolve.1} parent=1 // loop_body
      %s22 = ssub.s32 %s17, 1
      %s23 = ssub.s32 %s17, 2
      %s24 = sadd.s32 %s17, 1
      %s26 = sadd.s32 %s25, 1
      %p29 = scmp.eq.s32.totalorder %s17, 3
      %p30 = scmp.ne.s32.totalorder %s25, %s27
      %p31 = scmp.eq.s32.totalorder %s17, 0
      %p32 = por %p30, %p31
      %p33 = scmp.ne.s32.totalorder %s25, %s27
      %p34 = scmp.eq.s32.totalorder %s22, 3
      %p35 = por %p33, %p34
      %p36 = scmp.ne.s32.totalorder %s27, %s28
      %p37 = scmp.eq.s32.totalorder %s22, 0
      %p38 = por %p36, %p37
      %p39 = scmp.ne.s32.totalorder %s27, %s28
      %p40 = scmp.eq.s32.totalorder %s23, 3
      %p41 = por %p39, %p40
      %p43 = scmp.ne.s32.totalorder %s28, %s42
      %p44 = scmp.eq.s32.totalorder %s23, 0
      %p45 = por %p43, %p44
      %s46 = ssub.s32 %s17, %s24
      %p47 = scmp.eq.s32.totalorder %s46, 0
      %s49 = sadd.s32 %s48, 1
      %s50 = scalar_select %p47, %s48, %s49
      %p53 = pneg %p47
      %p54 = scmp.eq.s32.totalorder %s17, 3
      %p55 = por %p53, %p54
      %p56 = scmp.ne.s32.totalorder %s48, %s51
      %p57 = scmp.eq.s32.totalorder %s17, 0
      %p58 = por %p56, %p57
      %p59 = scmp.ne.s32.totalorder %s48, %s51
      %p60 = scmp.eq.s32.totalorder %s22, 3
      %p61 = por %p59, %p60
      %p62 = scmp.ne.s32.totalorder %s51, %s52
      %p63 = scmp.eq.s32.totalorder %s22, 0
      %p64 = por %p62, %p63
      %p65 = scmp.ne.s32.totalorder %s51, %s52
      %p66 = scmp.eq.s32.totalorder %s23, 3
      %p67 = por %p65, %p66
      %p69 = scmp.ne.s32.totalorder %s52, %s68
      %p70 = scmp.eq.s32.totalorder %s23, 0
      %p71 = por %p69, %p70
      %s72 = ssub.s32 %s17, %s24
      %p73 = scmp.eq.s32.totalorder %s72, 0
      %s75 = sadd.s32 %s74, 1
      %s76 = scalar_select %p73, %s74, %s75
      %p79 = pneg %p73
      %p80 = scmp.eq.s32.totalorder %s17, 3
      %p81 = por %p79, %p80
      %p82 = scmp.ne.s32.totalorder %s74, %s77
      %p83 = scmp.eq.s32.totalorder %s17, 0
      %p84 = por %p82, %p83
      %p85 = scmp.ne.s32.totalorder %s74, %s77
      %p86 = scmp.eq.s32.totalorder %s22, 3
      %p87 = por %p85, %p86
      %p88 = scmp.ne.s32.totalorder %s77, %s78
      %p89 = scmp.eq.s32.totalorder %s22, 0
      %p90 = por %p88, %p89
      %p91 = scmp.ne.s32.totalorder %s77, %s78
      %p92 = scmp.eq.s32.totalorder %s23, 3
      %p93 = por %p91, %p92
      %p95 = scmp.ne.s32.totalorder %s78, %s94
      %p96 = scmp.eq.s32.totalorder %s23, 0
      %p97 = por %p95, %p96
      %s98 = ssub.s32 %s17, %s24
      %p99 = scmp.eq.s32.totalorder %s98, 0
      %s101 = sadd.s32 %s100, 1
      %s102 = scalar_select %p99, %s100, %s101
      %p105 = pneg %p99
      %p106 = scmp.eq.s32.totalorder %s17, 3
      %p107 = por %p105, %p106
      %p108 = scmp.ne.s32.totalorder %s100, %s103
      %p109 = scmp.eq.s32.totalorder %s17, 0
      %p110 = por %p108, %p109
      %p111 = scmp.ne.s32.totalorder %s100, %s103
      %p112 = scmp.eq.s32.totalorder %s22, 3
      %p113 = por %p111, %p112
      %p114 = scmp.ne.s32.totalorder %s103, %s104
      %p115 = scmp.eq.s32.totalorder %s22, 0
      %p116 = por %p114, %p115
      %p117 = scmp.ne.s32.totalorder %s103, %s104
      %p118 = scmp.eq.s32.totalorder %s23, 3
      %p119 = por %p117, %p118
      %p121 = scmp.ne.s32.totalorder %s104, %s120
      %p122 = scmp.eq.s32.totalorder %s23, 0
      %p123 = por %p121, %p122
      %s125 = sadd.s32 %s124, 1
      %p128 = scmp.eq.s32.totalorder %s17, 3
      %p129 = scmp.ne.s32.totalorder %s124, %s126
      %p130 = scmp.eq.s32.totalorder %s17, 0
      %p131 = por %p129, %p130
      %p132 = scmp.ne.s32.totalorder %s124, %s126
      %p133 = scmp.eq.s32.totalorder %s22, 3
      %p134 = por %p132, %p133
      %p135 = scmp.ne.s32.totalorder %s126, %s127
      %p136 = scmp.eq.s32.totalorder %s22, 0
      %p137 = por %p135, %p136
      %p138 = scmp.ne.s32.totalorder %s126, %s127
      %p139 = scmp.eq.s32.totalorder %s23, 3
      %p140 = por %p138, %p139
      %p142 = scmp.ne.s32.totalorder %s127, %s141
      %p143 = scmp.eq.s32.totalorder %s23, 0
      %p144 = por %p142, %p143
      %s146 = sadd.s32 %s145, 1
      %p149 = scmp.eq.s32.totalorder %s17, 3
      %p150 = scmp.ne.s32.totalorder %s145, %s147
      %p151 = scmp.eq.s32.totalorder %s17, 0
      %p152 = por %p150, %p151
      %p153 = scmp.ne.s32.totalorder %s145, %s147
      %p154 = scmp.eq.s32.totalorder %s22, 3
      %p155 = por %p153, %p154
      %p156 = scmp.ne.s32.totalorder %s147, %s148
      %p157 = scmp.eq.s32.totalorder %s22, 0
      %p158 = por %p156, %p157
      %p159 = scmp.ne.s32.totalorder %s147, %s148
      %p160 = scmp.eq.s32.totalorder %s23, 3
      %p161 = por %p159, %p160
      %p163 = scmp.ne.s32.totalorder %s148, %s162
      %p164 = scmp.eq.s32.totalorder %s23, 0
      %p165 = por %p163, %p164
      %s167 = sadd.s32 %s166, 1
      %p170 = scmp.eq.s32.totalorder %s17, 3
      %p171 = scmp.ne.s32.totalorder %s166, %s168
      %p172 = scmp.eq.s32.totalorder %s17, 0
      %p173 = por %p171, %p172
      %p174 = scmp.ne.s32.totalorder %s166, %s168
      %p175 = scmp.eq.s32.totalorder %s22, 3
      %p176 = por %p174, %p175
      %p177 = scmp.ne.s32.totalorder %s168, %s169
      %p178 = scmp.eq.s32.totalorder %s22, 0
      %p179 = por %p177, %p178
      %p180 = scmp.ne.s32.totalorder %s168, %s169
      %p181 = scmp.eq.s32.totalorder %s23, 3
      %p182 = por %p180, %p181
      %p184 = scmp.ne.s32.totalorder %s169, %s183
      %p185 = scmp.eq.s32.totalorder %s23, 0
      %p186 = por %p184, %p185
      %s188 = sadd.s32 %s187, 1
      %p191 = scmp.eq.s32.totalorder %s17, 3
      %p192 = scmp.ne.s32.totalorder %s187, %s189
      %p193 = scmp.eq.s32.totalorder %s17, 0
      %p194 = por %p192, %p193
      %p195 = scmp.ne.s32.totalorder %s187, %s189
      %p196 = scmp.eq.s32.totalorder %s22, 3
      %p197 = por %p195, %p196
      %p198 = scmp.ne.s32.totalorder %s189, %s190
      %p199 = scmp.eq.s32.totalorder %s22, 0
      %p200 = por %p198, %p199
      %p201 = scmp.ne.s32.totalorder %s189, %s190
      %p202 = scmp.eq.s32.totalorder %s23, 3
      %p203 = por %p201, %p202
      %p205 = scmp.ne.s32.totalorder %s190, %s204
      %p206 = scmp.eq.s32.totalorder %s23, 0
      %p207 = por %p205, %p206
      %s208 = ssub.s32 %s17, %s24
      %p209 = scmp.eq.s32.totalorder %s208, 0
      %s211 = sadd.s32 %s210, 1
      %s212 = scalar_select %p209, %s210, %s211
      %p215 = pneg %p209
      %p216 = scmp.eq.s32.totalorder %s17, 3
      %p217 = por %p215, %p216
      %p218 = scmp.ne.s32.totalorder %s210, %s213
      %p219 = scmp.eq.s32.totalorder %s17, 0
      %p220 = por %p218, %p219
      %p221 = scmp.ne.s32.totalorder %s210, %s213
      %p222 = scmp.eq.s32.totalorder %s22, 3
      %p223 = por %p221, %p222
      %p224 = scmp.ne.s32.totalorder %s213, %s214
      %p225 = scmp.eq.s32.totalorder %s22, 0
      %p226 = por %p224, %p225
      %p227 = scmp.ne.s32.totalorder %s213, %s214
      %p228 = scmp.eq.s32.totalorder %s23, 3
      %p229 = por %p227, %p228
      %p231 = scmp.ne.s32.totalorder %s214, %s230
      %p232 = scmp.eq.s32.totalorder %s23, 0
      %p233 = por %p231, %p232
      %p234 = scmp.le.s32.totalorder 1, %s17
      %p235 = scmp.lt.s32.totalorder %s17, 5
      %p236 = pnand %p234, %p235
      %p237 = pneg %p236
      // Predicated region
      $region9: #{evolve.1} parent=5 // pred_check
        _
      $region10: #{evolve.1} parent=5 // pred_check_branch
        %239 = sbr.rel (%p236) target = $region12
      $region11: #{evolve.1} parent=5 // pred_region
        %s240 = ssub.s32 %s17, 1
        // Predicated region
        $region13: #{evolve.1} parent=11 // pred_check
          %p241 = pneg %p38
        $region14: #{evolve.1} parent=11 // pred_check_branch
          %243 = sbr.rel (%p241) target = $region16
        $region15: #{evolve.1} parent=11 // pred_region
          _
        $region16: #{evolve.1} parent=11 // pred_fallthru
          _
        // Predicated region
        $region17: #{evolve.1} parent=11 // pred_check
          %p244 = pneg %p137
        $region18: #{evolve.1} parent=11 // pred_check_branch
          %246 = sbr.rel (%p244) target = $region20
        $region19: #{evolve.1} parent=11 // pred_region
          _
        $region20: #{evolve.1} parent=11 // pred_fallthru
          _
        // Predicated region
        $region21: #{evolve.1} parent=11 // pred_check
          %p247 = pneg %p158
        $region22: #{evolve.1} parent=11 // pred_check_branch
          %249 = sbr.rel (%p247) target = $region24
        $region23: #{evolve.1} parent=11 // pred_region
          _
        $region24: #{evolve.1} parent=11 // pred_fallthru
          _
        // Predicated region
        $region25: #{evolve.1} parent=11 // pred_check
          %p250 = pneg %p179
        $region26: #{evolve.1} parent=11 // pred_check_branch
          %252 = sbr.rel (%p250) target = $region28
        $region27: #{evolve.1} parent=11 // pred_region
          _
        $region28: #{evolve.1} parent=11 // pred_fallthru
          _
        // Predicated region
        $region29: #{evolve.1} parent=11 // pred_check
          %p253 = pneg %p200
        $region30: #{evolve.1} parent=11 // pred_check_branch
          %255 = sbr.rel (%p253) target = $region32
        $region31: #{evolve.1} parent=11 // pred_region
          _
        $region32: #{evolve.1} parent=11 // pred_fallthru
          _
      $region12: #{evolve.1} parent=5 // pred_fallthru
        _
      %p256 = scmp.lt.s32.totalorder %s17, 4
      // Predicated region
      $region33: #{evolve.1} parent=5 // pred_check
        %p257 = pneg %p256
      $region34: #{evolve.1} parent=5 // pred_check_branch
        %259 = sbr.rel (%p257) target = $region36
      $region35: #{evolve.1} parent=5 // pred_region
        // Predicated region
        $region37: #{evolve.1} parent=35 // pred_check
          %p260 = pneg %p58
        $region38: #{evolve.1} parent=35 // pred_check_branch
          %262 = sbr.rel (%p260) target = $region40
        $region39: #{evolve.1} parent=35 // pred_region
          %p263 = scmp.lt.s32.totalorder %s17, 3
          %s264 = scalar_select %p263, %s17, 3
          %s265 = smul.addr %s264, 8
          %s266 = smul.addr %s265, 8
          %s267 = scalar_lea.vmem %s1, %s266
        $region40: #{evolve.1} parent=35 // pred_fallthru
          _
        // Predicated region
        $region41: #{evolve.1} parent=35 // pred_check
          %p268 = pneg %p84
        $region42: #{evolve.1} parent=35 // pred_check_branch
          %270 = sbr.rel (%p268) target = $region44
        $region43: #{evolve.1} parent=35 // pred_region
          %p271 = scmp.lt.s32.totalorder %s17, 3
          %s272 = scalar_select %p271, %s17, 3
          %s273 = smul.addr %s272, 4
          %s274 = smul.addr %s273, 8
          %s275 = scalar_lea.vmem %s2, %s274
        $region44: #{evolve.1} parent=35 // pred_fallthru
          _
        // Predicated region
        $region45: #{evolve.1} parent=35 // pred_check
          %p276 = pneg %p110
        $region46: #{evolve.1} parent=35 // pred_check_branch
          %278 = sbr.rel (%p276) target = $region48
        $region47: #{evolve.1} parent=35 // pred_region
          %p279 = scmp.lt.s32.totalorder %s17, 3
          %s280 = scalar_select %p279, %s17, 3
          %s281 = smul.addr %s280, 4
          %s282 = smul.addr %s281, 8
          %s283 = scalar_lea.vmem %s3, %s282
        $region48: #{evolve.1} parent=35 // pred_fallthru
          _
      $region36: #{evolve.1} parent=5 // pred_fallthru
        _
      %p284 = scmp.le.s32.totalorder 1, %s17
      %p285 = scmp.lt.s32.totalorder %s17, 5
      %p286 = pnand %p284, %p285
      %p287 = pneg %p286
      // Predicated region
      $region49: #{evolve.1} parent=5 // pred_check
        _
      $region50: #{evolve.1} parent=5 // pred_check_branch
        %289 = sbr.rel (%p286) target = $region52
      $region51: #{evolve.1} parent=5 // pred_region
        %s290 = ssub.s32 %s17, 1
        %p291 = pneg %p38
        %p292 = pneg %p35
        %p293 = scmp.lt.s32.totalorder %s22, 3
        %s294 = scalar_select %p293, %s22, 3
        %s295 = smul.addr %s294, 8
        %s296 = smul.addr %s295, 8
        %s297 = scalar_lea.vmem %s1, %s296
        %p298 = pneg %p64
        %p299 = pneg %p61
        %p300 = scmp.lt.s32.totalorder %s22, 3
        %s301 = scalar_select %p300, %s22, 3
        %s302 = smul.addr %s301, 4
        %s303 = smul.addr %s302, 8
        %s304 = scalar_lea.vmem %s2, %s303
        %p305 = pneg %p90
        %p306 = pneg %p87
        %p307 = scmp.lt.s32.totalorder %s22, 3
        %s308 = scalar_select %p307, %s22, 3
        %s309 = smul.addr %s308, 4
        %s310 = smul.addr %s309, 8
        %s311 = scalar_lea.vmem %s3, %s310
        %p312 = pneg %p116
        %p313 = pneg %p113
        %p314 = pneg %p137
        %p315 = pneg %p134
        %p316 = pneg %p158
        %p317 = pneg %p155
        %p318 = pneg %p179
        %p319 = pneg %p176
        %p320 = pneg %p200
        %p321 = pneg %p197
        %p322 = pneg %p226
        %p323 = pneg %p223
        %s324 = sand.u32 %s213, 1
        %s325 = scalar_lea.sflag [#allocation4], %s324
        %s326 = sand.u32 %s213, 1
        %s327 = smul.addr %s326, 16
        %s328 = scalar_lea.vmem [#allocation3], %s327
        %p329 = scmp.lt.s32.totalorder %s22, 3
        %s330 = scalar_select %p329, %s22, 3
        %s331 = smul.addr %s330, 8
        %s332 = smul.addr %s331, 8
        %s333 = scalar_lea.vmem %s1, %s332
        %p334 = scmp.lt.s32.totalorder %s22, 3
        %s335 = scalar_select %p334, %s22, 3
        %s336 = smul.addr %s335, 4
        %s337 = smul.addr %s336, 8
        %s338 = scalar_lea.vmem %s2, %s337
        %p339 = scmp.lt.s32.totalorder %s22, 3
        %s340 = scalar_select %p339, %s22, 3
        %s341 = smul.addr %s340, 4
        %s342 = smul.addr %s341, 8
        %s343 = scalar_lea.vmem %s3, %s342
        %p344 = scmp.eq.s32.totalorder %s22, 0
        // Predicated region
        $region53: #{evolve.1} parent=51 // pred_check
          %p345 = pneg %p344
        $region54: #{evolve.1} parent=51 // pred_check_branch
          %347 = sbr.rel (%p345) target = $region56
        $region55: #{evolve.1} parent=51 // pred_region
          %v348 = vld [vmem:[%s0] sm:$0xff]
          %v349 = vld [vmem:[%s0 + $0x8] sm:$0xff]
          %vm350 = vcmask 261120
          %351 = vst.msk [vmem:[#allocation2] sm:$0xff] %vm350, %v348
          %352 = vst.msk [vmem:[#allocation2 + $0x8] sm:$0xff] %vm350, %v349
        $region56: #{evolve.1} parent=51 // pred_fallthru
          _
        %v353 = vld [vmem:[%s333] sm:$0xff]
        %v354 = vld [vmem:[%s333 + $0x8] sm:$0xff]
        %v355 = vld [vmem:[%s333 + $0x10] sm:$0xff]
        %v356 = vld [vmem:[%s333 + $0x18] sm:$0xff]
        %v357 = vld [vmem:[%s333 + $0x20] sm:$0xff]
        %v358 = vld [vmem:[%s333 + $0x28] sm:$0xff]
        %v359 = vld [vmem:[%s333 + $0x30] sm:$0xff]
        %v360 = vld [vmem:[%s333 + $0x38] sm:$0xff]
        %v361 = vld [vmem:[%s338] sm:$0xff]
        %v362 = vld [vmem:[%s338 + $0x8] sm:$0xff]
        %v363 = vld [vmem:[%s338 + $0x10] sm:$0xff]
        %v364 = vld [vmem:[%s338 + $0x18] sm:$0xff]
        %v365 = vld [vmem:[%s343] sm:$0xff]
        %v366 = vld [vmem:[%s343 + $0x8] sm:$0xff]
        %v367 = vld [vmem:[%s343 + $0x10] sm:$0xff]
        %v368 = vld [vmem:[%s343 + $0x18] sm:$0xff]
        %v369 = vlaneseq
        %v370 = vand.u32 %v369, 127
        %371 = vset.pattern.permute.xlu0 0
        %372 = vperm.xlu0 %371, %v361
        %v373 = vpop.permute.xlu0 %372
        %374 = vset.pattern.permute.xlu0 0
        %375 = vperm.xlu0 %374, %v362
        %v376 = vpop.permute.xlu0 %375
        %377 = vset.pattern.permute.xlu0 0
        %378 = vperm.xlu0 %377, %v363
        %v379 = vpop.permute.xlu0 %378
        %380 = vset.pattern.permute.xlu0 0
        %381 = vperm.xlu0 %380, %v364
        %v382 = vpop.permute.xlu0 %381
        %vm383 = vcmp.eq.s32.totalorder %v370, %v373
        %vm384 = vcmp.eq.s32.totalorder %v370, %v376
        %vm385 = vcmp.eq.s32.totalorder %v370, %v379
        %vm386 = vcmp.eq.s32.totalorder %v370, %v382
        %v387 = vsel %vm383, 1, 0
        %v388 = vsel %vm384, 1, 0
        %v389 = vsel %vm385, 1, 0
        %v390 = vsel %vm386, 1, 0
        %v391 = vcvt.s32.f32 %v387
        %v392 = vcvt.s32.f32 %v388
        %v393 = vcvt.s32.f32 %v389
        %v394 = vcvt.s32.f32 %v390
        %396 = vset.pattern.permute.xlu0 0
        %397 = vperm.xlu0 %396, %v365
        %v398 = vpop.permute.xlu0 %397
        %401 = vset.pattern.permute.xlu0 0
        %402 = vperm.xlu0 %401, %v366
        %v403 = vpop.permute.xlu0 %402
        %406 = vset.pattern.permute.xlu0 0
        %407 = vperm.xlu0 %406, %v367
        %v408 = vpop.permute.xlu0 %407
        %411 = vset.pattern.permute.xlu0 0
        %412 = vperm.xlu0 %411, %v368
        %v413 = vpop.permute.xlu0 %412
        %v415 = vmul.f32 %v391, %v398
        %v416 = vmul.f32 %v392, %v403
        %v417 = vmul.f32 %v393, %v408
        %v418 = vmul.f32 %v394, %v413
        %vm419 = vcmask 523264
        %v421 = vsel %vm419, %v415, 0
        %v424 = vsel %vm419, %v416, 0
        %v427 = vsel %vm419, %v417, 0
        %v430 = vsel %vm419, %v418, 0
        %432 = vmatprep.subr.mxu0 0.0
        %433 = vmatpush1.msra.mxu0 0.0
        %434 = vmatprep.subr.mxu0 0.0
        %435 = vmatpush1.msra.mxu0 0.0
        %436 = vmatprep.subr.mxu0 0.0
        %437 = vmatpush1.msra.mxu0 0.0
        %438 = vmatprep.subr.mxu0 0.0
        %439 = vmatpush1.msra.mxu0 0.0
        %440 = vmatprep.subr.mxu0 0.0
        %441 = vmatpush1.msra.mxu0 0.0
        %442 = vmatprep.subr.mxu0 0.0
        %443 = vmatpush1.msra.mxu0 0.0
        %444 = vmatprep.subr.mxu0 0.0
        %445 = vmatpush1.msra.mxu0 0.0
        %446 = vmatprep.subr.mxu0 0.0
        %447 = vmatpush1.msra.mxu0 0.0
        %448 = vmatprep.subr.mxu0 0.0
        %449 = vmatpush1.msra.mxu0 %v360
        %450 = vmatprep.subr.mxu0 0.0
        %451 = vmatpush1.msra.mxu0 %v359
        %452 = vmatprep.subr.mxu0 0.0
        %453 = vmatpush1.msra.mxu0 %v358
        %454 = vmatprep.subr.mxu0 0.0
        %455 = vmatpush1.msra.mxu0 %v357
        %456 = vmatprep.subr.mxu0 0.0
        %457 = vmatpush1.msra.mxu0 %v356
        %458 = vmatprep.subr.mxu0 0.0
        %459 = vmatpush1.msra.mxu0 %v355
        %460 = vmatprep.subr.mxu0 0.0
        %461 = vmatpush1.msra.mxu0 %v354
        %462 = vmatprep.subr.mxu0 0.0
        %463 = vmatpush1.msra.mxu0 %v353
        %464 = vmatprep.subr.mxu0 0.0
        %465 = vmatpush2.msra.mxu0 0.0
        %466 = vmatprep.subr.mxu0 0.0
        %467 = vmatpush2.msra.mxu0 0.0
        %468 = vmatprep.subr.mxu0 0.0
        %469 = vmatpush2.msra.mxu0 0.0
        %470 = vmatprep.subr.mxu0 0.0
        %471 = vmatpush2.msra.mxu0 0.0
        %472 = vmatprep.subr.mxu0 0.0
        %473 = vmatpush2.msra.mxu0 0.0
        %474 = vmatprep.subr.mxu0 0.0
        %475 = vmatpush2.msra.mxu0 0.0
        %476 = vmatprep.subr.mxu0 0.0
        %477 = vmatpush2.msra.mxu0 0.0
        %478 = vmatprep.subr.mxu0 0.0
        %479 = vmatpush2.msra.mxu0 0.0
        %480 = vmatprep.subr.mxu0 0.0
        %481 = vmatpush2.msra.mxu0 0.0
        %482 = vmatprep.subr.mxu0 0.0
        %483 = vmatpush2.msra.mxu0 0.0
        %484 = vmatprep.subr.mxu0 0.0
        %485 = vmatpush2.msra.mxu0 0.0
        %486 = vmatprep.subr.mxu0 0.0
        %487 = vmatpush2.msra.mxu0 0.0
        %488 = vmatprep.subr.mxu0 0.0
        %489 = vmatpush2.msra.mxu0 0.0
        %490 = vmatprep.subr.mxu0 0.0
        %491 = vmatpush2.msra.mxu0 0.0
        %492 = vmatprep.subr.mxu0 0.0
        %493 = vmatpush2.msra.mxu0 0.0
        %494 = vmatprep.subr.mxu0 0.0
        %495 = vmatpush2.msra.mxu0 0.0
        %496 = vmatprep.mubr.f32.mxu0 0.0
        %497 = vmatmul.mubr.f32.gmra.mxu0 %v421
        %v498 = vpop.f32.mrf.mxu0
        %v499 = vadd.f32 0.0, %v498
        %v500 = vpop.f32.mrf.mxu0
        %501 = vmatprep.mubr.f32.mxu0 0.0
        %502 = vmatmul.mubr.f32.gmra.mxu0 %v424
        %v503 = vpop.f32.mrf.mxu0
        %v504 = vadd.f32 0.0, %v503
        %v505 = vpop.f32.mrf.mxu0
        %506 = vmatprep.mubr.f32.mxu0 0.0
        %507 = vmatmul.mubr.f32.gmra.mxu0 %v427
        %v508 = vpop.f32.mrf.mxu0
        %v509 = vadd.f32 0.0, %v508
        %v510 = vpop.f32.mrf.mxu0
        %511 = vmatprep.mubr.f32.mxu0 0.0
        %512 = vmatmul.mubr.f32.gmra.mxu0 %v430
        %v513 = vpop.f32.mrf.mxu0
        %v514 = vadd.f32 0.0, %v513
        %v515 = vpop.f32.mrf.mxu0
        %516 = vdwg.mxu0
        %v517 = vld [vmem:[%s4] sm:$0xff]
        %v518 = vld [vmem:[%s4 + $0x8] sm:$0xff]
        %v519 = vld [vmem:[%s4 + $0x10] sm:$0xff]
        %v520 = vld [vmem:[%s4 + $0x18] sm:$0xff]
        %v521 = vld [vmem:[%s4 + $0x20] sm:$0xff]
        %v522 = vld [vmem:[%s4 + $0x28] sm:$0xff]
        %vm523 = vcmask 130048
        %v525 = vsel %vm523, %v517, 0
        %v528 = vsel %vm523, %v518, 0
        %v531 = vsel %vm523, %v519, 0
        %v534 = vsel %vm523, %v520, 0
        %v537 = vsel %vm523, %v521, 0
        %v540 = vsel %vm523, %v522, 0
        %v543 = vsel %vm523, %v499, 0
        %v546 = vsel %vm523, %v504, 0
        %v549 = vsel %vm523, %v509, 0
        %v552 = vsel %vm523, %v514, 0
        %554 = vmatprep.subr.mxu0 0.0
        %555 = vmatpush1.xpose.msra.mxu0 0.0
        %556 = vmatprep.subr.mxu0 0.0
        %557 = vmatpush1.xpose.msra.mxu0 0.0
        %558 = vmatprep.subr.mxu0 0.0
        %559 = vmatpush1.xpose.msra.mxu0 0.0
        %560 = vmatprep.subr.mxu0 0.0
        %561 = vmatpush1.xpose.msra.mxu0 0.0
        %562 = vmatprep.subr.mxu0 0.0
        %563 = vmatpush1.xpose.msra.mxu0 0.0
        %564 = vmatprep.subr.mxu0 0.0
        %565 = vmatpush1.xpose.msra.mxu0 0.0
        %566 = vmatprep.subr.mxu0 0.0
        %567 = vmatpush1.xpose.msra.mxu0 0.0
        %568 = vmatprep.subr.mxu0 0.0
        %569 = vmatpush1.xpose.msra.mxu0 0.0
        %570 = vmatprep.subr.mxu0 0.0
        %571 = vmatpush1.xpose.msra.mxu0 0.0
        %572 = vmatprep.subr.mxu0 0.0
        %573 = vmatpush1.xpose.msra.mxu0 0.0
        %574 = vmatprep.subr.mxu0 0.0
        %575 = vmatpush1.xpose.msra.mxu0 0.0
        %576 = vmatprep.subr.mxu0 0.0
        %577 = vmatpush1.xpose.msra.mxu0 0.0
        %578 = vmatprep.subr.mxu0 0.0
        %579 = vmatpush1.xpose.msra.mxu0 %v552
        %580 = vmatprep.subr.mxu0 0.0
        %581 = vmatpush1.xpose.msra.mxu0 %v549
        %582 = vmatprep.subr.mxu0 0.0
        %583 = vmatpush1.xpose.msra.mxu0 %v546
        %584 = vmatprep.subr.mxu0 0.0
        %585 = vmatpush1.xpose.msra.mxu0 %v543
        %586 = vmatprep.subr.mxu0 0.0
        %587 = vmatpush2.xpose.msra.mxu0 0.0
        %588 = vmatprep.subr.mxu0 0.0
        %589 = vmatpush2.xpose.msra.mxu0 0.0
        %590 = vmatprep.subr.mxu0 0.0
        %591 = vmatpush2.xpose.msra.mxu0 0.0
        %592 = vmatprep.subr.mxu0 0.0
        %593 = vmatpush2.xpose.msra.mxu0 0.0
        %594 = vmatprep.subr.mxu0 0.0
        %595 = vmatpush2.xpose.msra.mxu0 0.0
        %596 = vmatprep.subr.mxu0 0.0
        %597 = vmatpush2.xpose.msra.mxu0 0.0
        %598 = vmatprep.subr.mxu0 0.0
        %599 = vmatpush2.xpose.msra.mxu0 0.0
        %600 = vmatprep.subr.mxu0 0.0
        %601 = vmatpush2.xpose.msra.mxu0 0.0
        %602 = vmatprep.subr.mxu0 0.0
        %603 = vmatpush2.xpose.msra.mxu0 0.0
        %604 = vmatprep.subr.mxu0 0.0
        %605 = vmatpush2.xpose.msra.mxu0 0.0
        %606 = vmatprep.subr.mxu0 0.0
        %607 = vmatpush2.xpose.msra.mxu0 0.0
        %608 = vmatprep.subr.mxu0 0.0
        %609 = vmatpush2.xpose.msra.mxu0 0.0
        %610 = vmatprep.subr.mxu0 0.0
        %611 = vmatpush2.xpose.msra.mxu0 0.0
        %612 = vmatprep.subr.mxu0 0.0
        %613 = vmatpush2.xpose.msra.mxu0 0.0
        %614 = vmatprep.subr.mxu0 0.0
        %615 = vmatpush2.xpose.msra.mxu0 0.0
        %616 = vmatprep.subr.mxu0 0.0
        %617 = vmatpush2.xpose.msra.mxu0 0.0
        %618 = vmatprep.mubr.f32.mxu0 0.0
        %619 = vmatmul.mubr.f32.gmra.mxu0 %v525
        %v620 = vpop.f32.mrf.mxu0
        %v621 = vadd.f32 0.0, %v620
        %v622 = vpop.f32.mrf.mxu0
        %623 = vmatprep.mubr.f32.mxu0 0.0
        %624 = vmatmul.mubr.f32.gmra.mxu0 %v528
        %v625 = vpop.f32.mrf.mxu0
        %v626 = vadd.f32 0.0, %v625
        %v627 = vpop.f32.mrf.mxu0
        %628 = vmatprep.mubr.f32.mxu0 0.0
        %629 = vmatmul.mubr.f32.gmra.mxu0 %v531
        %v630 = vpop.f32.mrf.mxu0
        %v631 = vadd.f32 0.0, %v630
        %v632 = vpop.f32.mrf.mxu0
        %633 = vmatprep.mubr.f32.mxu0 0.0
        %634 = vmatmul.mubr.f32.gmra.mxu0 %v534
        %v635 = vpop.f32.mrf.mxu0
        %v636 = vadd.f32 0.0, %v635
        %v637 = vpop.f32.mrf.mxu0
        %638 = vmatprep.mubr.f32.mxu0 0.0
        %639 = vmatmul.mubr.f32.gmra.mxu0 %v537
        %v640 = vpop.f32.mrf.mxu0
        %v641 = vadd.f32 0.0, %v640
        %v642 = vpop.f32.mrf.mxu0
        %643 = vmatprep.mubr.f32.mxu0 0.0
        %644 = vmatmul.mubr.f32.gmra.mxu0 %v540
        %v645 = vpop.f32.mrf.mxu0
        %v646 = vadd.f32 0.0, %v645
        %v647 = vpop.f32.mrf.mxu0
        %648 = vdwg.mxu0
        %v649 = vld [vmem:[#allocation2] sm:$0xff]
        %v650 = vld [vmem:[#allocation2 + $0x8] sm:$0xff]
        %v651 = vld [vmem:[%s5] sm:$0xff]
        %v652 = vld [vmem:[%s5 + $0x8] sm:$0xff]
        %v653 = vld [vmem:[%s5 + $0x10] sm:$0xff]
        %v654 = vld [vmem:[%s5 + $0x18] sm:$0xff]
        %v656 = vsel %vm523, %v651, 0
        %v659 = vsel %vm523, %v652, 0
        %v662 = vsel %vm523, %v653, 0
        %v665 = vsel %vm523, %v654, 0
        %667 = vmatprep.subr.mxu0 0.0
        %668 = vmatpush1.msra.mxu0 0.0
        %669 = vmatprep.subr.mxu0 0.0
        %670 = vmatpush1.msra.mxu0 0.0
        %671 = vmatprep.subr.mxu0 0.0
        %672 = vmatpush1.msra.mxu0 0.0
        %673 = vmatprep.subr.mxu0 0.0
        %674 = vmatpush1.msra.mxu0 0.0
        %675 = vmatprep.subr.mxu0 0.0
        %676 = vmatpush1.msra.mxu0 0.0
        %677 = vmatprep.subr.mxu0 0.0
        %678 = vmatpush1.msra.mxu0 0.0
        %679 = vmatprep.subr.mxu0 0.0
        %680 = vmatpush1.msra.mxu0 0.0
        %681 = vmatprep.subr.mxu0 0.0
        %682 = vmatpush1.msra.mxu0 0.0
        %683 = vmatprep.subr.mxu0 0.0
        %684 = vmatpush1.msra.mxu0 0.0
        %685 = vmatprep.subr.mxu0 0.0
        %686 = vmatpush1.msra.mxu0 0.0
        %687 = vmatprep.subr.mxu0 0.0
        %688 = vmatpush1.msra.mxu0 0.0
        %689 = vmatprep.subr.mxu0 0.0
        %690 = vmatpush1.msra.mxu0 0.0
        %691 = vmatprep.subr.mxu0 0.0
        %692 = vmatpush1.msra.mxu0 0.0
        %693 = vmatprep.subr.mxu0 0.0
        %694 = vmatpush1.msra.mxu0 0.0
        %695 = vmatprep.subr.mxu0 0.0
        %696 = vmatpush1.msra.mxu0 %v650
        %697 = vmatprep.subr.mxu0 0.0
        %698 = vmatpush1.msra.mxu0 %v649
        %699 = vmatprep.subr.mxu0 0.0
        %700 = vmatpush2.msra.mxu0 0.0
        %701 = vmatprep.subr.mxu0 0.0
        %702 = vmatpush2.msra.mxu0 0.0
        %703 = vmatprep.subr.mxu0 0.0
        %704 = vmatpush2.msra.mxu0 0.0
        %705 = vmatprep.subr.mxu0 0.0
        %706 = vmatpush2.msra.mxu0 0.0
        %707 = vmatprep.subr.mxu0 0.0
        %708 = vmatpush2.msra.mxu0 0.0
        %709 = vmatprep.subr.mxu0 0.0
        %710 = vmatpush2.msra.mxu0 0.0
        %711 = vmatprep.subr.mxu0 0.0
        %712 = vmatpush2.msra.mxu0 0.0
        %713 = vmatprep.subr.mxu0 0.0
        %714 = vmatpush2.msra.mxu0 0.0
        %715 = vmatprep.subr.mxu0 0.0
        %716 = vmatpush2.msra.mxu0 0.0
        %717 = vmatprep.subr.mxu0 0.0
        %718 = vmatpush2.msra.mxu0 0.0
        %719 = vmatprep.subr.mxu0 0.0
        %720 = vmatpush2.msra.mxu0 0.0
        %721 = vmatprep.subr.mxu0 0.0
        %722 = vmatpush2.msra.mxu0 0.0
        %723 = vmatprep.subr.mxu0 0.0
        %724 = vmatpush2.msra.mxu0 0.0
        %725 = vmatprep.subr.mxu0 0.0
        %726 = vmatpush2.msra.mxu0 0.0
        %727 = vmatprep.subr.mxu0 0.0
        %728 = vmatpush2.msra.mxu0 0.0
        %729 = vmatprep.subr.mxu0 0.0
        %730 = vmatpush2.msra.mxu0 0.0
        %731 = vmatprep.mubr.f32.mxu0 0.0
        %732 = vmatmul.mubr.f32.gmra.mxu0 %v656
        %v733 = vpop.f32.mrf.mxu0
        %v734 = vadd.f32 0.0, %v733
        %v735 = vpop.f32.mrf.mxu0
        %736 = vmatprep.mubr.f32.mxu0 0.0
        %737 = vmatmul.mubr.f32.gmra.mxu0 %v659
        %v738 = vpop.f32.mrf.mxu0
        %v739 = vadd.f32 0.0, %v738
        %v740 = vpop.f32.mrf.mxu0
        %741 = vmatprep.mubr.f32.mxu0 0.0
        %742 = vmatmul.mubr.f32.gmra.mxu0 %v662
        %v743 = vpop.f32.mrf.mxu0
        %v744 = vadd.f32 0.0, %v743
        %v745 = vpop.f32.mrf.mxu0
        %746 = vmatprep.mubr.f32.mxu0 0.0
        %747 = vmatmul.mubr.f32.gmra.mxu0 %v665
        %v748 = vpop.f32.mrf.mxu0
        %v749 = vadd.f32 0.0, %v748
        %v750 = vpop.f32.mrf.mxu0
        %751 = vdwg.mxu0
        %v752 = vld [vmem:[%s7] sm:$0xff]
        %v753 = vld [vmem:[%s7 + $0x8] sm:$0xff]
        %v754 = vld [vmem:[%s7 + $0x10] sm:$0xff]
        %v755 = vld [vmem:[%s7 + $0x18] sm:$0xff]
        %v756 = vld [vmem:[%s7 + $0x20] sm:$0xff]
        %v757 = vld [vmem:[%s7 + $0x28] sm:$0xff]
        %v758 = vadd.f32 %v621, %v734
        %v759 = vadd.f32 %v626, %v739
        %v760 = vadd.f32 %v758, %v752
        %v761 = vadd.f32 %v759, %v753
        %v762 = vxor.u32 %v760, 2147483648
        %v763 = vxor.u32 %v761, 2147483648
        %v764 = vmul.f32 %v762, 1.442695
        %v765 = vpow.pop %v764
        %v766 = vmul.f32 %v763, 1.442695
        %v767 = vpow.pop %v766
        %v768 = vadd.f32 %v765, 1.0
        %v769 = vadd.f32 %v767, 1.0
        %v770 = vrcp.pop %v768
        %v771 = vmul.f32 1.0, %v770
        %v772 = vrcp.pop %v769
        %v773 = vmul.f32 1.0, %v772
        %v774 = vadd.f32 %v631, %v744
        %v775 = vadd.f32 %v636, %v749
        %v776 = vadd.f32 %v774, %v754
        %v777 = vadd.f32 %v775, %v755
        %v778 = vxor.u32 %v776, 2147483648
        %v779 = vxor.u32 %v777, 2147483648
        %v780 = vmul.f32 %v778, 1.442695
        %v781 = vpow.pop %v780
        %v782 = vmul.f32 %v779, 1.442695
        %v783 = vpow.pop %v782
        %v784 = vadd.f32 %v781, 1.0
        %v785 = vadd.f32 %v783, 1.0
        %v786 = vrcp.pop %v784
        %v787 = vmul.f32 1.0, %v786
        %v788 = vrcp.pop %v785
        %v789 = vmul.f32 1.0, %v788
        %v790 = vld [vmem:[%s6] sm:$0xff]
        %v791 = vld [vmem:[%s6 + $0x8] sm:$0xff]
        %v792 = vmul.f32 %v787, %v649
        %v793 = vmul.f32 %v789, %v650
        %v795 = vsel %vm523, %v790, 0
        %v798 = vsel %vm523, %v791, 0
        %800 = vmatprep.subr.mxu0 0.0
        %801 = vmatpush1.msra.mxu0 0.0
        %802 = vmatprep.subr.mxu0 0.0
        %803 = vmatpush1.msra.mxu0 0.0
        %804 = vmatprep.subr.mxu0 0.0
        %805 = vmatpush1.msra.mxu0 0.0
        %806 = vmatprep.subr.mxu0 0.0
        %807 = vmatpush1.msra.mxu0 0.0
        %808 = vmatprep.subr.mxu0 0.0
        %809 = vmatpush1.msra.mxu0 0.0
        %810 = vmatprep.subr.mxu0 0.0
        %811 = vmatpush1.msra.mxu0 0.0
        %812 = vmatprep.subr.mxu0 0.0
        %813 = vmatpush1.msra.mxu0 0.0
        %814 = vmatprep.subr.mxu0 0.0
        %815 = vmatpush1.msra.mxu0 0.0
        %816 = vmatprep.subr.mxu0 0.0
        %817 = vmatpush1.msra.mxu0 0.0
        %818 = vmatprep.subr.mxu0 0.0
        %819 = vmatpush1.msra.mxu0 0.0
        %820 = vmatprep.subr.mxu0 0.0
        %821 = vmatpush1.msra.mxu0 0.0
        %822 = vmatprep.subr.mxu0 0.0
        %823 = vmatpush1.msra.mxu0 0.0
        %824 = vmatprep.subr.mxu0 0.0
        %825 = vmatpush1.msra.mxu0 0.0
        %826 = vmatprep.subr.mxu0 0.0
        %827 = vmatpush1.msra.mxu0 0.0
        %828 = vmatprep.subr.mxu0 0.0
        %829 = vmatpush1.msra.mxu0 %v793
        %830 = vmatprep.subr.mxu0 0.0
        %831 = vmatpush1.msra.mxu0 %v792
        %832 = vmatprep.subr.mxu0 0.0
        %833 = vmatpush2.msra.mxu0 0.0
        %834 = vmatprep.subr.mxu0 0.0
        %835 = vmatpush2.msra.mxu0 0.0
        %836 = vmatprep.subr.mxu0 0.0
        %837 = vmatpush2.msra.mxu0 0.0
        %838 = vmatprep.subr.mxu0 0.0
        %839 = vmatpush2.msra.mxu0 0.0
        %840 = vmatprep.subr.mxu0 0.0
        %841 = vmatpush2.msra.mxu0 0.0
        %842 = vmatprep.subr.mxu0 0.0
        %843 = vmatpush2.msra.mxu0 0.0
        %844 = vmatprep.subr.mxu0 0.0
        %845 = vmatpush2.msra.mxu0 0.0
        %846 = vmatprep.subr.mxu0 0.0
        %847 = vmatpush2.msra.mxu0 0.0
        %848 = vmatprep.subr.mxu0 0.0
        %849 = vmatpush2.msra.mxu0 0.0
        %850 = vmatprep.subr.mxu0 0.0
        %851 = vmatpush2.msra.mxu0 0.0
        %852 = vmatprep.subr.mxu0 0.0
        %853 = vmatpush2.msra.mxu0 0.0
        %854 = vmatprep.subr.mxu0 0.0
        %855 = vmatpush2.msra.mxu0 0.0
        %856 = vmatprep.subr.mxu0 0.0
        %857 = vmatpush2.msra.mxu0 0.0
        %858 = vmatprep.subr.mxu0 0.0
        %859 = vmatpush2.msra.mxu0 0.0
        %860 = vmatprep.subr.mxu0 0.0
        %861 = vmatpush2.msra.mxu0 0.0
        %862 = vmatprep.subr.mxu0 0.0
        %863 = vmatpush2.msra.mxu0 0.0
        %864 = vmatprep.mubr.f32.mxu0 0.0
        %865 = vmatmul.mubr.f32.gmra.mxu0 %v795
        %v866 = vpop.f32.mrf.mxu0
        %v867 = vadd.f32 0.0, %v866
        %v868 = vpop.f32.mrf.mxu0
        %869 = vmatprep.mubr.f32.mxu0 0.0
        %870 = vmatmul.mubr.f32.gmra.mxu0 %v798
        %v871 = vpop.f32.mrf.mxu0
        %v872 = vadd.f32 0.0, %v871
        %v873 = vpop.f32.mrf.mxu0
        %874 = vdwg.mxu0
        %v875 = vadd.f32 %v641, %v867
        %v876 = vadd.f32 %v646, %v872
        %v877 = vadd.f32 %v875, %v756
        %v878 = vadd.f32 %v876, %v757
        %v879 = vtanh.pop %v877
        %v880 = vtanh.pop %v878
        %v881 = vsub.f32 %v879, %v649
        %v882 = vsub.f32 %v880, %v650
        %v883 = vmul.f32 %v771, %v881
        %v884 = vmul.f32 %v773, %v882
        %v885 = vadd.f32 %v649, %v883
        %v886 = vadd.f32 %v650, %v884
        %vm887 = vcmask 261120
        %888 = vst.msk [vmem:[#allocation2] sm:$0xff] %vm887, %v885
        %889 = vst.msk [vmem:[#allocation2 + $0x8] sm:$0xff] %vm887, %v886
        %890 = vst.msk [vmem:[%s328] sm:$0xff] %vm887, %v885
        %891 = vst.msk [vmem:[%s328 + $0x8] sm:$0xff] %vm887, %v886
        %s892 = sand.u32 %s213, 1
        %s893 = scalar_lea.sflag [#allocation4], %s892
        %s894 = sand.u32 %s213, 1
        %s895 = smul.addr %s894, 16
        %s896 = scalar_lea.vmem [#allocation3], %s895
        // Predicated region
        $region57: #{evolve.1} parent=51 // pred_check
          %p897 = pneg %p223
        $region58: #{evolve.1} parent=51 // pred_check_branch
          %899 = sbr.rel (%p897) target = $region60
        $region59: #{evolve.1} parent=51 // pred_region
          %s901 = ssub.s32 256, 256
          %902 = vsyncadd %s893, %s901
          %s903 = smul.addr %s22, 2
          %s904 = smul.addr %s903, 128
          %s905 = scalar_lea.hbm %s8, %s904
          %s906 = sshll.u32 %s896, 4
          %s907 = int_to_ptr.vmem [resolvable:$true] %s906
          %912 = dma.vmem_to_hbm [thread:$0]  %s907, 256, %s905, %s893, 128, 128, 8
        $region60: #{evolve.1} parent=51 // pred_fallthru
          _
      $region52: #{evolve.1} parent=5 // pred_fallthru
        _
      %p913 = scmp.le.s32.totalorder 2, %s17
      // Predicated region
      $region61: #{evolve.1} parent=5 // pred_check
        %p914 = pneg %p913
      $region62: #{evolve.1} parent=5 // pred_check_branch
        %916 = sbr.rel (%p914) target = $region64
      $region63: #{evolve.1} parent=5 // pred_region
        %s917 = ssub.s32 %s17, 2
        // Predicated region
        $region65: #{evolve.1} parent=63 // pred_check
          %p918 = pneg %p229
        $region66: #{evolve.1} parent=63 // pred_check_branch
          %920 = sbr.rel (%p918) target = $region68
        $region67: #{evolve.1} parent=63 // pred_region
          %s921 = sand.u32 %s214, 1
          %s922 = scalar_lea.sflag [#allocation4], %s921
          %s923 = sand.u32 %s214, 1
          %s924 = smul.addr %s923, 16
          %s925 = scalar_lea.vmem [#allocation3], %s924
          %926 = dma.done %s922, 256
        $region68: #{evolve.1} parent=63 // pred_fallthru
          _
      $region64: #{evolve.1} parent=5 // pred_fallthru
        _
    $region6: #{evolve.1} parent=1 // loop_footer
      %s21 = sadd.s32 1, %s17
    $region7: #{evolve.1} parent=1 // loop_footer_branch
      %16 = sbr.rel target = $region3
    $region8: #{evolve.1} parent=1 // loop_exit
      _
    %927 = vsyncpa [#allocation4], 1
    %s928 = scalar_lea.sflag [#allocation4], 1
    %929 = vsyncpa %s928, 1

</llo_original>
